<compile_context>
chip_gen: v7x
topology: tpu7x:2x2x1
jax: 0.10.0
libtpu: 0.0.40
codegen_flags: <defaults>
</compile_context>

<pallas_src>
import jax
import jax.numpy as jnp
from jax.experimental import pallas as pl
from jax.experimental.pallas import tpu as pltpu

INIT = 0.01  # unused: the PyTorch __init__ overwrites the normal init with ones


def envelope_pi_kernel(exp_ref, pi_ref, fac_ref, out_ref):
    # exp_ref: (TR, KIM)  rows = (walker, electron-j) on sublanes, lanes = k*i*m
    # pi_ref:  (KIM, KI)  block-diagonal pi, resident across the grid
    # fac_ref: (TR, KI)
    # out_ref: (TR, KI)   lane+sublane-dense contiguous store
    s = jnp.dot(exp_ref[...], pi_ref[...], preferred_element_type=jnp.float32)
    out_ref[...] = (fac_ref[...].astype(jnp.float32) * s).astype(out_ref.dtype)


def _round_up(x, r):
    return -(-x // r) * r


def _tpu_vmem_capacity_bytes():
    try:
        return int(pltpu.get_tpu_info().vmem_capacity_bytes)
    except Exception:
        return 64 * 1024 * 1024  # conservative fallback: assume v7x-class VMEM


def _plan_tiles(n_rows, kim, ki, itemsize):
    """Rows per grid step + scoped-VMEM limit, from PADDED tile footprints."""
    LANE, SUB = 128, 8
    kim_l = _round_up(kim, LANE)
    ki_l = _round_up(ki, LANE)
    # Grid-invariant pi tile; budget it double-buffered to be safe.
    pi_tile_bytes = _round_up(kim, SUB) * ki_l * itemsize

    vmem_cap = _tpu_vmem_capacity_bytes()
    if vmem_cap <= 64 * 1024 * 1024:           # v7x-class: 64 MiB physical VMEM
        total_budget = 44 * 1024 * 1024
        target_exp_tile = 6 * 1024 * 1024
    else:                                       # v5e / v6e: 128 MiB physical
        total_budget = 88 * 1024 * 1024
        target_exp_tile = 12 * 1024 * 1024

    stream_budget = max(total_budget - 2 * pi_tile_bytes, 8 * 1024 * 1024)
    row_bytes = (kim_l + 2 * ki_l) * itemsize            # exp + factor + out
    tr_budget = max(SUB, stream_budget // (2 * row_bytes))  # double-buffered
    tr_target = max(SUB, target_exp_tile // (kim_l * itemsize))
    tr = max(SUB, (min(tr_budget, tr_target) // SUB) * SUB)
    if tr >= n_rows:
        tr = n_rows                    # single full-extent block (always legal)

    need = 2 * tr * row_bytes + 2 * pi_tile_bytes + 8 * 1024 * 1024
    vmem_limit = int(min(vmem_cap - 4 * 1024 * 1024,
                         max(16 * 1024 * 1024, need)))
    return tr, vmem_limit


def envelope_pi(factor, exponential, pi):
    """factor: (n,j,k,i), exponential: (n,j,k,i,m), pi: (k,i,m) -> (n,k,j,i)."""
    n, j, k, i, m = exponential.shape
    KI = k * i
    KIM = KI * m
    NJ = n * j
    itemsize = jnp.dtype(exponential.dtype).itemsize

    # Free reshapes (row-major contiguous): no relayout of the large arrays.
    exp_2d = exponential.reshape(NJ, KIM)
    fac_2d = factor.reshape(NJ, KI)

    # Block-diagonal pi: P[ki*m + mm, ki'] = pi[ki, mm] * (ki == ki').
    # Parameter-sized constant; in a full model it is precomputed once.
    pi_flat = pi.reshape(KI, m).astype(exponential.dtype)
    eye = jnp.eye(KI, dtype=exponential.dtype)
    pi_mat = (pi_flat[:, :, None] * eye[:, None, :]).reshape(KIM, KI)

    tr, vmem_limit = _plan_tiles(NJ, KIM, KI, itemsize)
    grid = (pl.cdiv(NJ, tr),)

    cost = pl.CostEstimate(
        flops=2 * NJ * KIM * KI + NJ * KI,
        transcendentals=0,
        bytes_accessed=(NJ * KIM + 2 * NJ * KI + KIM * KI) * itemsize)

    out_2d = pl.pallas_call(
        envelope_pi_kernel,
        out_shape=jax.ShapeDtypeStruct((NJ, KI), factor.dtype),
        grid=grid,
        in_specs=[
            pl.BlockSpec((tr, KIM), lambda b: (b, 0)),
            pl.BlockSpec((KIM, KI), lambda b: (0, 0)),    # resident across grid
            pl.BlockSpec((tr, KI), lambda b: (b, 0)),
        ],
        out_specs=pl.BlockSpec((tr, KI), lambda b: (b, 0)),
        compiler_params=pltpu.CompilerParams(
            dimension_semantics=("parallel",),
            vmem_limit_bytes=vmem_limit),
        cost_estimate=cost,
    )(exp_2d, pi_mat, fac_2d)

    out = out_2d.reshape(n, j, k, i)
    # The module's .permute((0,2,1,3)) -> (n,k,j,i): output-sized layout glue,
    # cheapest left in XLA (smallest array; kernel lane order follows the
    # native j-major layout of `exponential`/`factor`).
    return jnp.transpose(out, (0, 2, 1, 3))


if __name__ == "__main__":
    key = jax.random.PRNGKey(0)
    n_samples = 2        # n (walkers)
    n_spin_det = 4       # j (electrons) and i (orbitals)
    n_determinants = 8   # k
    n_atoms = 4          # m
    dtype = jnp.float32

    k1, k2, k3 = jax.random.split(key, 3)
    exponential = jax.random.normal(
        k1, (n_samples, n_spin_det, n_determinants, n_spin_det, n_atoms),
        dtype=dtype)
    factor = jax.random.normal(
        k2, (n_samples, n_spin_det, n_determinants, n_spin_det), dtype=dtype)

    def reference(factor, exponential, pi):
        return jnp.transpose(
            factor * jnp.einsum('njkim,kim->njki', exponential, pi),
            (0, 2, 1, 3))

    env = jax.jit(envelope_pi)

    # 1) Module init: the PyTorch __init__ draws normal(0, INIT) but then
    #    overwrites pi with ones -> deterministic ones here.
    pi_ones = jnp.ones((n_determinants, n_spin_det, n_atoms), dtype=dtype)
    out = jax.block_until_ready(env(factor, exponential, pi_ones))
    assert out.shape == (n_samples, n_determinants, n_spin_det, n_spin_det), out.shape
    assert out.dtype == dtype
    assert jnp.allclose(out, reference(factor, exponential, pi_ones),
                        atol=1e-5, rtol=1e-5), "mismatch vs reference (pi=ones)"

    # 2) Trained-parameter case: random pi exercises the full einsum path.
    pi_rand = jax.random.normal(
        k3, (n_determinants, n_spin_det, n_atoms), dtype=dtype)
    out2 = jax.block_until_ready(env(factor, exponential, pi_rand))
    assert jnp.allclose(out2, reference(factor, exponential, pi_rand),
                        atol=1e-5, rtol=1e-5), "mismatch vs reference (pi=random)"

    print("KERNEL_OK")
</pallas_src>

<mosaic_0001>
module attributes {stable_mosaic.version = 11 : i64} {
  func.func @envelope_pi_kernel(%arg0: i32, %arg1: memref<8x128xf32, #tpu.memory_space<vmem>>, %arg2: memref<128x32xf32, #tpu.memory_space<vmem>>, %arg3: memref<8x32xf32, #tpu.memory_space<vmem>>, %arg4: memref<8x32xf32, #tpu.memory_space<vmem>>) attributes {dimension_semantics = [#tpu.dimension_semantics<parallel>], iteration_bounds = array<i64: 1>, scalar_prefetch = 0 : i64, scratch_operands = 0 : i64, tpu.core_type = #tpu.core_type<tc>, window_params = [{transform_indices = @transform_0, window_bounds = array<i64: 8, 128>}, {pipeline_mode = #tpu.pipeline_mode<synchronous>, transform_indices = @transform_1, window_bounds = array<i64: 128, 32>}, {transform_indices = @transform_2, window_bounds = array<i64: 8, 32>}, {transform_indices = @transform_3, window_bounds = array<i64: 8, 32>}]} {
    %c0 = arith.constant 0 : index
    %c0_0 = arith.constant 0 : index
    %0 = vector.load %arg1[%c0, %c0_0] : memref<8x128xf32, #tpu.memory_space<vmem>>, vector<8x128xf32>
    %c0_1 = arith.constant 0 : index
    %c0_2 = arith.constant 0 : index
    %1 = vector.load %arg2[%c0_1, %c0_2] : memref<128x32xf32, #tpu.memory_space<vmem>>, vector<128x32xf32>
    %cst = arith.constant dense<0.000000e+00> : vector<8x32xf32>
    %2 = tpu.matmul %0, %1, %cst {dimension_numbers = #tpu.dot_dimension_numbers<[1], [0], [0], [1], [0, 0, 1, 1], [], []>} : vector<8x128xf32>, vector<128x32xf32>, vector<8x32xf32> -> vector<8x32xf32>
    %c0_3 = arith.constant 0 : index
    %c0_4 = arith.constant 0 : index
    %3 = vector.load %arg3[%c0_3, %c0_4] : memref<8x32xf32, #tpu.memory_space<vmem>>, vector<8x32xf32>
    %4 = arith.mulf %3, %2 : vector<8x32xf32>
    %c0_5 = arith.constant 0 : index
    %c0_6 = arith.constant 0 : index
    %5 = vector.load %arg4[%c0_5, %c0_6] : memref<8x32xf32, #tpu.memory_space<vmem>>, vector<8x32xf32>
    tpu.vector_store %arg4[%c0_5, %c0_6], %4 {strides = array<i32>} : memref<8x32xf32, #tpu.memory_space<vmem>>, vector<8x32xf32>,
    return
  }
  func.func @transform_0(%arg0: i32) -> (i32, i32) {
    %c0_i32 = arith.constant 0 : i32
    %c0_i32_0 = arith.constant 0 : i32
    return %arg0, %c0_i32 : i32, i32
  }
  func.func @transform_1(%arg0: i32) -> (i32, i32) {
    %c0_i32 = arith.constant 0 : i32
    %c0_i32_0 = arith.constant 0 : i32
    %c0_i32_1 = arith.constant 0 : i32
    return %c0_i32, %c0_i32_0 : i32, i32
  }
  func.func @transform_2(%arg0: i32) -> (i32, i32) {
    %c0_i32 = arith.constant 0 : i32
    %c0_i32_0 = arith.constant 0 : i32
    return %arg0, %c0_i32 : i32, i32
  }
  func.func @transform_3(%arg0: i32) -> (i32, i32) {
    %c0_i32 = arith.constant 0 : i32
    %c0_i32_0 = arith.constant 0 : i32
    return %arg0, %c0_i32 : i32, i32
  }
}

</mosaic_0001>

<llo_original>
// kernel: envelope_pi.1
$region0: #{envelope_pi.1}
  #allocation0 [shape = 'u32[]', space=smem, size = 0x4, offset = 0x4, fixed_abs, tag = 'smem constant byte address 0x4 - core index']
  #allocation1 [shape = 'u32[144,128]{1,0:T(1,128)}', space=vmem, size = 0x12000, scoped, tag = 'internal scratch']
  %s0 = inlined_call_operand.vmem [shape: f32[8,128], index: 0, kind: input, shape index: {}]
  %s1 = inlined_call_operand.vmem [shape: f32[128,32], index: 1, kind: input, shape index: {}]
  %s2 = inlined_call_operand.vmem [shape: f32[8,32], index: 2, kind: input, shape index: {}]
  %s3 = inlined_call_operand.vmem [shape: f32[8,32], index: 3, kind: output, shape index: {}]
  %s4 = sld [smem:[#allocation0]]
  $region22: #{envelope_pi.1} parent=0
    _
  %s6 = ssub.s32 1, %s4
  %s7 = scalar_select 0, %s6, %s4
  // Predicated region
  $region2: #{envelope_pi.1} parent=0 // pred_check
    _
  $region3: #{envelope_pi.1} parent=0 // pred_check_branch
    %9 = sbr.rel (0) target = $region5
  $region4: #{envelope_pi.1} parent=0 // pred_region
    _
  $region5: #{envelope_pi.1} parent=0 // pred_fallthru
    _
  // Predicated region
  $region6: #{envelope_pi.1} parent=0 // pred_check
    _
  $region7: #{envelope_pi.1} parent=0 // pred_check_branch
    %11 = sbr.rel (0) target = $region9
  $region8: #{envelope_pi.1} parent=0 // pred_region
    _
  $region9: #{envelope_pi.1} parent=0 // pred_fallthru
    _
  // Predicated region
  $region10: #{envelope_pi.1} parent=0 // pred_check
    _
  $region11: #{envelope_pi.1} parent=0 // pred_check_branch
    %13 = sbr.rel (0) target = $region13
  $region12: #{envelope_pi.1} parent=0 // pred_region
    _
  $region13: #{envelope_pi.1} parent=0 // pred_fallthru
    _
  %v14 = vld [vmem:[%s0] sm:$0xff]
  %v15 = vld [vmem:[%s1] sm:$0xff]
  %v16 = vld [vmem:[%s1 + $0x8] sm:$0xff]
  %v17 = vld [vmem:[%s1 + $0x10] sm:$0xff]
  %v18 = vld [vmem:[%s1 + $0x18] sm:$0xff]
  %v19 = vld [vmem:[%s1 + $0x20] sm:$0xff]
  %v20 = vld [vmem:[%s1 + $0x28] sm:$0xff]
  %v21 = vld [vmem:[%s1 + $0x30] sm:$0xff]
  %v22 = vld [vmem:[%s1 + $0x38] sm:$0xff]
  %v23 = vld [vmem:[%s1 + $0x40] sm:$0xff]
  %v24 = vld [vmem:[%s1 + $0x48] sm:$0xff]
  %v25 = vld [vmem:[%s1 + $0x50] sm:$0xff]
  %v26 = vld [vmem:[%s1 + $0x58] sm:$0xff]
  %v27 = vld [vmem:[%s1 + $0x60] sm:$0xff]
  %v28 = vld [vmem:[%s1 + $0x68] sm:$0xff]
  %v29 = vld [vmem:[%s1 + $0x70] sm:$0xff]
  %v30 = vld [vmem:[%s1 + $0x78] sm:$0xff]
  %31 = vmatprep.subr.mxu0 0.0
  %32 = vmatpush1.msra.mxu0 %v15
  %33 = vmatprep.subr.mxu0 0.0
  %34 = vmatpush1.msra.mxu0 %v16
  %35 = vmatprep.subr.mxu0 0.0
  %36 = vmatpush1.msra.mxu0 %v17
  %37 = vmatprep.subr.mxu0 0.0
  %38 = vmatpush1.msra.mxu0 %v18
  %39 = vmatprep.subr.mxu0 0.0
  %40 = vmatpush1.msra.mxu0 %v19
  %41 = vmatprep.subr.mxu0 0.0
  %42 = vmatpush1.msra.mxu0 %v20
  %43 = vmatprep.subr.mxu0 0.0
  %44 = vmatpush1.msra.mxu0 %v21
  %45 = vmatprep.subr.mxu0 0.0
  %46 = vmatpush1.msra.mxu0 %v22
  %47 = vmatprep.subr.mxu0 0.0
  %48 = vmatpush1.msra.mxu0 %v23
  %49 = vmatprep.subr.mxu0 0.0
  %50 = vmatpush1.msra.mxu0 %v24
  %51 = vmatprep.subr.mxu0 0.0
  %52 = vmatpush1.msra.mxu0 %v25
  %53 = vmatprep.subr.mxu0 0.0
  %54 = vmatpush1.msra.mxu0 %v26
  %55 = vmatprep.subr.mxu0 0.0
  %56 = vmatpush1.msra.mxu0 %v27
  %57 = vmatprep.subr.mxu0 0.0
  %58 = vmatpush1.msra.mxu0 %v28
  %59 = vmatprep.subr.mxu0 0.0
  %60 = vmatpush1.msra.mxu0 %v29
  %61 = vmatprep.subr.mxu0 0.0
  %62 = vmatpush1.msra.mxu0 %v30
  %63 = vmatprep.subr.mxu0 0.0
  %64 = vmatpush1.msra.mxu0 0.0
  %65 = vmatprep.subr.mxu0 0.0
  %66 = vmatpush1.msra.mxu0 0.0
  %67 = vmatprep.subr.mxu0 0.0
  %68 = vmatpush1.msra.mxu0 0.0
  %69 = vmatprep.subr.mxu0 0.0
  %70 = vmatpush1.msra.mxu0 0.0
  %71 = vmatprep.subr.mxu0 0.0
  %72 = vmatpush1.msra.mxu0 0.0
  %73 = vmatprep.subr.mxu0 0.0
  %74 = vmatpush1.msra.mxu0 0.0
  %75 = vmatprep.subr.mxu0 0.0
  %76 = vmatpush1.msra.mxu0 0.0
  %77 = vmatprep.subr.mxu0 0.0
  %78 = vmatpush1.msra.mxu0 0.0
  %79 = vmatprep.subr.mxu0 0.0
  %80 = vmatpush1.msra.mxu0 0.0
  %81 = vmatprep.subr.mxu0 0.0
  %82 = vmatpush1.msra.mxu0 0.0
  %83 = vmatprep.subr.mxu0 0.0
  %84 = vmatpush1.msra.mxu0 0.0
  %85 = vmatprep.subr.mxu0 0.0
  %86 = vmatpush1.msra.mxu0 0.0
  %87 = vmatprep.subr.mxu0 0.0
  %88 = vmatpush1.msra.mxu0 0.0
  %89 = vmatprep.subr.mxu0 0.0
  %90 = vmatpush1.msra.mxu0 0.0
  %91 = vmatprep.subr.mxu0 0.0
  %92 = vmatpush1.msra.mxu0 0.0
  %93 = vmatprep.subr.mxu0 0.0
  %94 = vmatpush1.msra.mxu0 0.0
  %95 = vmatprep.mubr.f32.mxu0 0.0
  %96 = vmatmul.mubr.f32.gmra.mrb[0].mxu0 %v14
  %v97 = vpop.f32.mrb[0].mxu0
  %v98 = vadd.f32 0.0, %v97
  %v99 = vpop.f32.mrb[0].mxu0
  %100 = vdwg.mxu0
  %v101 = vld [vmem:[%s2] sm:$0xff]
  %v102 = vmul.f32 %v101, %v98
  %vm103 = vcmask 261120
  %104 = vst.msk [vmem:[%s3] sm:$0xff] %vm103, %v102
  // Predicated region
  $region14: #{envelope_pi.1} parent=0 // pred_check
    _
  $region15: #{envelope_pi.1} parent=0 // pred_check_branch
    %106 = sbr.rel (0) target = $region17
  $region16: #{envelope_pi.1} parent=0 // pred_region
    _
  $region17: #{envelope_pi.1} parent=0 // pred_fallthru
    _
  // Predicated region
  $region18: #{envelope_pi.1} parent=0 // pred_check
    _
  $region19: #{envelope_pi.1} parent=0 // pred_check_branch
    %108 = sbr.rel (0) target = $region21
  $region20: #{envelope_pi.1} parent=0 // pred_region
    _
  $region21: #{envelope_pi.1} parent=0 // pred_fallthru
    _

</llo_original>
